<compile_context>
chip_gen: v7x
topology: tpu7x:2x2x1
jax: 0.10.0
libtpu: 0.0.40
codegen_flags: <defaults>
</compile_context>

<pallas_src>
import functools

import jax
import jax.numpy as jnp
from jax import lax
from jax.experimental import pallas as pl
from jax.experimental.pallas import tpu as pltpu

_LANE = 128
_SUBLANE = 8


def _round_up(x: int, m: int) -> int:
    return ((x + m - 1) // m) * m


def adapter_kernel(x_ref, w1_ref, w2_ref, o_ref):
    # x_ref:  (tile_n, feat)  VMEM, streamed by rows
    # w1_ref: (hid, feat)     VMEM, resident (PyTorch layout, maybe zero-padded)
    # w2_ref: (feat, hid)     VMEM, resident (PyTorch layout, maybe zero-padded)
    # o_ref:  (tile_n, feat)
    x = x_ref[...]
    # h = relu(x @ w1.T): contract over feat (transposed-RHS, native on MXU).
    h = lax.dot_general(x, w1_ref[...], (((1,), (1,)), ((), ())),
                        preferred_element_type=jnp.float32)
    h = jnp.maximum(h, 0.0)
    # y = relu(h @ w2.T): contract over hid.
    y = lax.dot_general(h.astype(w2_ref.dtype), w2_ref[...],
                        (((1,), (1,)), ((), ())),
                        preferred_element_type=jnp.float32)
    o_ref[...] = jnp.maximum(y, 0.0).astype(o_ref.dtype)


def _vmem_budget_bytes():
    """Per-generation VMEM sizing (v7x: 64 MiB/TC, v5e/v6e: 128 MiB)."""
    try:
        cap = pltpu.get_tpu_info().vmem_capacity_bytes
    except Exception:  # pragma: no cover - conservative fallback (v7x size)
        cap = 64 * 1024 * 1024
    budget = int(cap * 0.70)       # what _pick_tile_n is allowed to plan with
    limit = int(cap * 0.85)        # vmem_limit_bytes, leaves Mosaic headroom
    return budget, limit


def _pick_tile_n(n, feat, hid, x_itemsize, w_itemsize, budget):
    """Row tile: large enough to amortize per-step overhead / MXU fill-drain,
    small enough to fit VMEM, and chosen to keep partial-tile waste small."""
    n_cap = _round_up(max(n, 1), _SUBLANE)
    cands = []
    for c in (2048, 1024, 512, 256, 128, 64, 32, 16, 8):
        t = min(c, n_cap)
        if t not in cands:
            cands.append(t)

    def fits(t):
        x_b = 2 * t * feat * x_itemsize            # double-buffered input tile
        o_b = 2 * t * feat * x_itemsize            # double-buffered output tile
        w_b = 2 * hid * feat * w_itemsize          # both weights, single-buffered
        tmp = t * hid * 4 + t * hid * w_itemsize + t * feat * 4   # h, cast, y
        return x_b + o_b + w_b + tmp <= budget

    fitting = [t for t in cands if fits(t)]
    if not fitting:
        return min(cands)

    def waste_frac(t):
        n_p = _round_up(n, t)
        return (n_p - n) / n_p

    tile = None
    for t in fitting:                     # largest-first
        if waste_frac(t) <= 0.125:        # <= 12.5% wasted rows in the last tile
            tile = t
            break
    if tile is None:
        tile = min(fitting, key=lambda t: (waste_frac(t), -t))

    # Prefer >= 2 grid steps so a dual-TensorCore part (v7x) isn't half idle.
    while tile > _SUBLANE and -(-n // tile) < 2 and n > tile // 2:
        tile = max(_SUBLANE, _round_up(tile // 2, _SUBLANE))
    return tile


@functools.partial(jax.jit, static_argnames=("tile_n",))
def adapter_forward(x, w1, w2, *, tile_n=None):
    """Adapter forward: relu(relu(x @ w1.T) @ w2.T).

    x:  (..., c_in)        activations (f32 or bf16)
    w1: (hidden, c_in)     first Linear weight, PyTorch layout (hidden = c_in // r)
    w2: (c_in, hidden)     second Linear weight, PyTorch layout
    """
    orig_shape = x.shape
    c_in = orig_shape[-1]
    x2 = x.reshape(-1, c_in)
    n = x2.shape[0]
    hidden = w1.shape[0]
    assert w1.shape == (hidden, c_in) and w2.shape == (c_in, hidden)

    feat = _round_up(c_in, _LANE)
    hid = _round_up(hidden, _LANE)
    pad_feat = feat != c_in
    pad_hid = hid != hidden

    # Pad weights only when a feature dim is not lane-aligned.  Exact: zero
    # rows/cols contribute nothing and ReLU(0) = 0.  Typical adapter sizes
    # (c_in % 256 == 0) take the completely copy-free path.
    if pad_feat or pad_hid:
        w1p = jnp.zeros((hid, feat), dtype=w1.dtype).at[:hidden, :c_in].set(w1)
        w2p = jnp.zeros((feat, hid), dtype=w2.dtype).at[:c_in, :hidden].set(w2)
    else:
        w1p, w2p = w1, w2
    # x / output only need padding when c_in itself is not lane-aligned.
    xin = (jnp.zeros((n, feat), dtype=x2.dtype).at[:, :c_in].set(x2)
           if pad_feat else x2)

    x_itemsize = jnp.dtype(x2.dtype).itemsize
    w_itemsize = jnp.dtype(w1.dtype).itemsize
    budget, vmem_limit = _vmem_budget_bytes()

    w_resident = 2 * hid * feat * w_itemsize
    if w_resident > int(budget * 0.8):
        # TODO(synk): add a hidden/c_in-tiled accumulator path (extra "arbitrary"
        # grid axis + f32 VMEM scratch) for adapters whose weights exceed VMEM.
        raise NotImplementedError(
            "Adapter weights do not fit resident in VMEM on this chip; "
            "tiled-weight fallback not implemented.")

    if tile_n is None:
        tile_n = _pick_tile_n(n, feat, hid, x_itemsize, w_itemsize, budget)
    grid = (pl.cdiv(n, tile_n),)

    cost = pl.CostEstimate(
        flops=4 * n * feat * hid,                      # two matmuls, 2*M*K*N each
        transcendentals=0,
        bytes_accessed=(xin.size * x_itemsize
                        + (w1p.size + w2p.size) * w_itemsize
                        + n * feat * x_itemsize),
    )

    out = pl.pallas_call(
        adapter_kernel,
        out_shape=jax.ShapeDtypeStruct((n, feat), x2.dtype),
        grid=grid,
        in_specs=[
            # x: streamed by row tiles (double-buffered by default).
            pl.BlockSpec((tile_n, feat), lambda i: (i, 0)),
            # weights: constant index -> resident, single-buffered.
            pl.BlockSpec((hid, feat), lambda i: (0, 0),
                         pipeline_mode=pl.Buffered(1)),
            pl.BlockSpec((feat, hid), lambda i: (0, 0),
                         pipeline_mode=pl.Buffered(1)),
        ],
        out_specs=pl.BlockSpec((tile_n, feat), lambda i: (i, 0)),
        compiler_params=pltpu.CompilerParams(
            dimension_semantics=("parallel",),   # rows independent -> both TCs on v7x
            vmem_limit_bytes=vmem_limit,
        ),
        cost_estimate=cost,
    )(xin, w1p, w2p)

    if pad_feat:
        out = out[:, :c_in]
    return out.reshape(orig_shape)


if __name__ == "__main__":
    # Small shapes consistent with the module: c_in=32, reduction=2 -> hidden=16.
    N, c_in, reduction = 8, 32, 2
    hidden = c_in // reduction

    key = jax.random.PRNGKey(0)
    kx, k1, k2 = jax.random.split(key, 3)

    x = jax.random.normal(kx, (N, c_in), dtype=jnp.float32)
    # PyTorch nn.Linear weight shapes: W1 (hidden, c_in), W2 (c_in, hidden).
    w1 = jax.random.normal(k1, (hidden, c_in), dtype=jnp.float32) * 0.1
    w2 = jax.random.normal(k2, (c_in, hidden), dtype=jnp.float32) * 0.1

    out = adapter_forward(x, w1, w2)
    out = jax.block_until_ready(out)

    # Reference check in plain JAX (same math as the PyTorch module, f32).
    ref = jnp.maximum(jnp.maximum(x @ w1.T, 0.0) @ w2.T, 0.0)
    assert out.shape == (N, c_in)
    assert jnp.allclose(out, ref, atol=1e-5, rtol=1e-5), "mismatch vs reference"

    print("KERNEL_OK")
</pallas_src>

<mosaic_0001>
module attributes {stable_mosaic.version = 11 : i64} {
  func.func @adapter_kernel(%arg0: i32, %arg1: memref<8x128xf32, #tpu.memory_space<vmem>>, %arg2: memref<128x128xf32, #tpu.memory_space<vmem>>, %arg3: memref<128x128xf32, #tpu.memory_space<vmem>>, %arg4: memref<8x128xf32, #tpu.memory_space<vmem>>) attributes {dimension_semantics = [#tpu.dimension_semantics<parallel>], iteration_bounds = array<i64: 1>, scalar_prefetch = 0 : i64, scratch_operands = 0 : i64, tpu.core_type = #tpu.core_type<tc>, window_params = [{transform_indices = @transform_0, window_bounds = array<i64: 8, 128>}, {pipeline_mode = #tpu.pipeline_mode<synchronous>, transform_indices = @transform_1, window_bounds = array<i64: 128, 128>}, {pipeline_mode = #tpu.pipeline_mode<synchronous>, transform_indices = @transform_2, window_bounds = array<i64: 128, 128>}, {transform_indices = @transform_3, window_bounds = array<i64: 8, 128>}]} {
    %c0 = arith.constant 0 : index
    %c0_0 = arith.constant 0 : index
    %0 = vector.load %arg1[%c0, %c0_0] : memref<8x128xf32, #tpu.memory_space<vmem>>, vector<8x128xf32>
    %c0_1 = arith.constant 0 : index
    %c0_2 = arith.constant 0 : index
    %1 = vector.load %arg2[%c0_1, %c0_2] : memref<128x128xf32, #tpu.memory_space<vmem>>, vector<128x128xf32>
    %cst = arith.constant dense<0.000000e+00> : vector<8x128xf32>
    %2 = tpu.matmul %0, %1, %cst {dimension_numbers = #tpu.dot_dimension_numbers<[1], [1], [0], [0], [0, 0, 1, 0], [], []>} : vector<8x128xf32>, vector<128x128xf32>, vector<8x128xf32> -> vector<8x128xf32>
    %cst_3 = arith.constant 0.000000e+00 : f32
    %3 = vector.broadcast %cst_3 : f32 to vector<8x128xf32>
    %4 = arith.maximumf %2, %3 : vector<8x128xf32>
    %c0_4 = arith.constant 0 : index
    %c0_5 = arith.constant 0 : index
    %5 = vector.load %arg3[%c0_4, %c0_5] : memref<128x128xf32, #tpu.memory_space<vmem>>, vector<128x128xf32>
    %cst_6 = arith.constant dense<0.000000e+00> : vector<8x128xf32>
    %6 = tpu.matmul %4, %5, %cst_6 {dimension_numbers = #tpu.dot_dimension_numbers<[1], [1], [0], [0], [0, 0, 1, 0], [], []>} : vector<8x128xf32>, vector<128x128xf32>, vector<8x128xf32> -> vector<8x128xf32>
    %cst_7 = arith.constant 0.000000e+00 : f32
    %7 = vector.broadcast %cst_7 : f32 to vector<8x128xf32>
    %8 = arith.maximumf %6, %7 : vector<8x128xf32>
    %c0_8 = arith.constant 0 : index
    %c0_9 = arith.constant 0 : index
    %9 = vector.load %arg4[%c0_8, %c0_9] : memref<8x128xf32, #tpu.memory_space<vmem>>, vector<8x128xf32>
    tpu.vector_store %arg4[%c0_8, %c0_9], %8 {strides = array<i32>} : memref<8x128xf32, #tpu.memory_space<vmem>>, vector<8x128xf32>,
    return
  }
  func.func @transform_0(%arg0: i32) -> (i32, i32) {
    %c0_i32 = arith.constant 0 : i32
    %c0_i32_0 = arith.constant 0 : i32
    return %arg0, %c0_i32 : i32, i32
  }
  func.func @transform_1(%arg0: i32) -> (i32, i32) {
    %c0_i32 = arith.constant 0 : i32
    %c0_i32_0 = arith.constant 0 : i32
    %c0_i32_1 = arith.constant 0 : i32
    return %c0_i32, %c0_i32_0 : i32, i32
  }
  func.func @transform_2(%arg0: i32) -> (i32, i32) {
    %c0_i32 = arith.constant 0 : i32
    %c0_i32_0 = arith.constant 0 : i32
    %c0_i32_1 = arith.constant 0 : i32
    return %c0_i32, %c0_i32_0 : i32, i32
  }
  func.func @transform_3(%arg0: i32) -> (i32, i32) {
    %c0_i32 = arith.constant 0 : i32
    %c0_i32_0 = arith.constant 0 : i32
    return %arg0, %c0_i32 : i32, i32
  }
}

</mosaic_0001>

<llo_original>
// kernel: adapter_forward.1
$region0: #{adapter_forward.1}
  #allocation0 [shape = 'u32[]', space=smem, size = 0x4, offset = 0x4, fixed_abs, tag = 'smem constant byte address 0x4 - core index']
  #allocation1 [shape = 'u32[144,128]{1,0:T(1,128)}', space=vmem, size = 0x12000, scoped, tag = 'internal scratch']
  %s0 = inlined_call_operand.vmem [shape: f32[8,128], index: 0, kind: input, shape index: {}]
  %s1 = inlined_call_operand.vmem [shape: f32[128,128], index: 1, kind: input, shape index: {}]
  %s2 = inlined_call_operand.vmem [shape: f32[128,128], index: 2, kind: input, shape index: {}]
  %s3 = inlined_call_operand.hbm [shape: f32[8,128], index: 3, kind: output, shape index: {}]
  %s4 = sld [smem:[#allocation0]]
  $region22: #{adapter_forward.1} parent=0
    _
  %s6 = ssub.s32 1, %s4
  %s7 = scalar_select 0, %s6, %s4
  $region1: #{adapter_forward.1} parent=0
    #allocation2 [shape = 'u8[4096]{0}', space=vmem, size = 0x1000, scoped, tag = 'output window, operand 0, single buffered']
    #allocation3 [shape = 's32[1]{0}', space=sflag, size = 0x4, scoped, tag = 'scoped memory for adapter_forward.1']
    %8 = vsyncpa [#allocation3], 0
    // Predicated region
    $region2: #{adapter_forward.1} parent=1 // pred_check
      _
    $region3: #{adapter_forward.1} parent=1 // pred_check_branch
      %10 = sbr.rel (0) target = $region5
    $region4: #{adapter_forward.1} parent=1 // pred_region
      _
    $region5: #{adapter_forward.1} parent=1 // pred_fallthru
      _
    // Predicated region
    $region6: #{adapter_forward.1} parent=1 // pred_check
      _
    $region7: #{adapter_forward.1} parent=1 // pred_check_branch
      %12 = sbr.rel (0) target = $region9
    $region8: #{adapter_forward.1} parent=1 // pred_region
      _
    $region9: #{adapter_forward.1} parent=1 // pred_fallthru
      _
    // Predicated region
    $region10: #{adapter_forward.1} parent=1 // pred_check
      _
    $region11: #{adapter_forward.1} parent=1 // pred_check_branch
      %14 = sbr.rel (0) target = $region13
    $region12: #{adapter_forward.1} parent=1 // pred_region
      _
    $region13: #{adapter_forward.1} parent=1 // pred_fallthru
      _
    %v15 = vld [vmem:[%s0] sm:$0xff]
    %v16 = vld [vmem:[%s1] sm:$0xff]
    %v17 = vld [vmem:[%s1 + $0x8] sm:$0xff]
    %v18 = vld [vmem:[%s1 + $0x10] sm:$0xff]
    %v19 = vld [vmem:[%s1 + $0x18] sm:$0xff]
    %v20 = vld [vmem:[%s1 + $0x20] sm:$0xff]
    %v21 = vld [vmem:[%s1 + $0x28] sm:$0xff]
    %v22 = vld [vmem:[%s1 + $0x30] sm:$0xff]
    %v23 = vld [vmem:[%s1 + $0x38] sm:$0xff]
    %v24 = vld [vmem:[%s1 + $0x40] sm:$0xff]
    %v25 = vld [vmem:[%s1 + $0x48] sm:$0xff]
    %v26 = vld [vmem:[%s1 + $0x50] sm:$0xff]
    %v27 = vld [vmem:[%s1 + $0x58] sm:$0xff]
    %v28 = vld [vmem:[%s1 + $0x60] sm:$0xff]
    %v29 = vld [vmem:[%s1 + $0x68] sm:$0xff]
    %v30 = vld [vmem:[%s1 + $0x70] sm:$0xff]
    %v31 = vld [vmem:[%s1 + $0x78] sm:$0xff]
    %32 = vmatprep.subr.mxu0 0.0
    %33 = vmatpush1.xpose.msra.mxu0 %v16
    %34 = vmatprep.subr.mxu0 0.0
    %35 = vmatpush1.xpose.msra.mxu0 %v17
    %36 = vmatprep.subr.mxu0 0.0
    %37 = vmatpush1.xpose.msra.mxu0 %v18
    %38 = vmatprep.subr.mxu0 0.0
    %39 = vmatpush1.xpose.msra.mxu0 %v19
    %40 = vmatprep.subr.mxu0 0.0
    %41 = vmatpush1.xpose.msra.mxu0 %v20
    %42 = vmatprep.subr.mxu0 0.0
    %43 = vmatpush1.xpose.msra.mxu0 %v21
    %44 = vmatprep.subr.mxu0 0.0
    %45 = vmatpush1.xpose.msra.mxu0 %v22
    %46 = vmatprep.subr.mxu0 0.0
    %47 = vmatpush1.xpose.msra.mxu0 %v23
    %48 = vmatprep.subr.mxu0 0.0
    %49 = vmatpush1.xpose.msra.mxu0 %v24
    %50 = vmatprep.subr.mxu0 0.0
    %51 = vmatpush1.xpose.msra.mxu0 %v25
    %52 = vmatprep.subr.mxu0 0.0
    %53 = vmatpush1.xpose.msra.mxu0 %v26
    %54 = vmatprep.subr.mxu0 0.0
    %55 = vmatpush1.xpose.msra.mxu0 %v27
    %56 = vmatprep.subr.mxu0 0.0
    %57 = vmatpush1.xpose.msra.mxu0 %v28
    %58 = vmatprep.subr.mxu0 0.0
    %59 = vmatpush1.xpose.msra.mxu0 %v29
    %60 = vmatprep.subr.mxu0 0.0
    %61 = vmatpush1.xpose.msra.mxu0 %v30
    %62 = vmatprep.subr.mxu0 0.0
    %63 = vmatpush1.xpose.msra.mxu0 %v31
    %64 = vmatprep.subr.mxu0 0.0
    %65 = vmatpush1.xpose.msra.mxu0 0.0
    %66 = vmatprep.subr.mxu0 0.0
    %67 = vmatpush1.xpose.msra.mxu0 0.0
    %68 = vmatprep.subr.mxu0 0.0
    %69 = vmatpush1.xpose.msra.mxu0 0.0
    %70 = vmatprep.subr.mxu0 0.0
    %71 = vmatpush1.xpose.msra.mxu0 0.0
    %72 = vmatprep.subr.mxu0 0.0
    %73 = vmatpush1.xpose.msra.mxu0 0.0
    %74 = vmatprep.subr.mxu0 0.0
    %75 = vmatpush1.xpose.msra.mxu0 0.0
    %76 = vmatprep.subr.mxu0 0.0
    %77 = vmatpush1.xpose.msra.mxu0 0.0
    %78 = vmatprep.subr.mxu0 0.0
    %79 = vmatpush1.xpose.msra.mxu0 0.0
    %80 = vmatprep.subr.mxu0 0.0
    %81 = vmatpush1.xpose.msra.mxu0 0.0
    %82 = vmatprep.subr.mxu0 0.0
    %83 = vmatpush1.xpose.msra.mxu0 0.0
    %84 = vmatprep.subr.mxu0 0.0
    %85 = vmatpush1.xpose.msra.mxu0 0.0
    %86 = vmatprep.subr.mxu0 0.0
    %87 = vmatpush1.xpose.msra.mxu0 0.0
    %88 = vmatprep.subr.mxu0 0.0
    %89 = vmatpush1.xpose.msra.mxu0 0.0
    %90 = vmatprep.subr.mxu0 0.0
    %91 = vmatpush1.xpose.msra.mxu0 0.0
    %92 = vmatprep.subr.mxu0 0.0
    %93 = vmatpush1.xpose.msra.mxu0 0.0
    %94 = vmatprep.subr.mxu0 0.0
    %95 = vmatpush1.xpose.msra.mxu0 0.0
    %96 = vmatprep.mubr.f32.mxu0 0.0
    %97 = vmatmul.mubr.f32.gmra.mrb[0].mxu0 %v15
    %v98 = vpop.f32.mrb[0].mxu0
    %v99 = vadd.f32 0.0, %v98
    %v100 = vpop.f32.mrb[0].mxu0
    %101 = vdwg.mxu0
    %v102 = vmax.f32 %v99, 0.0
    %v103 = vld [vmem:[%s2] sm:$0xff]
    %v104 = vld [vmem:[%s2 + $0x8] sm:$0xff]
    %v105 = vld [vmem:[%s2 + $0x10] sm:$0xff]
    %v106 = vld [vmem:[%s2 + $0x18] sm:$0xff]
    %v107 = vld [vmem:[%s2 + $0x20] sm:$0xff]
    %v108 = vld [vmem:[%s2 + $0x28] sm:$0xff]
    %v109 = vld [vmem:[%s2 + $0x30] sm:$0xff]
    %v110 = vld [vmem:[%s2 + $0x38] sm:$0xff]
    %v111 = vld [vmem:[%s2 + $0x40] sm:$0xff]
    %v112 = vld [vmem:[%s2 + $0x48] sm:$0xff]
    %v113 = vld [vmem:[%s2 + $0x50] sm:$0xff]
    %v114 = vld [vmem:[%s2 + $0x58] sm:$0xff]
    %v115 = vld [vmem:[%s2 + $0x60] sm:$0xff]
    %v116 = vld [vmem:[%s2 + $0x68] sm:$0xff]
    %v117 = vld [vmem:[%s2 + $0x70] sm:$0xff]
    %v118 = vld [vmem:[%s2 + $0x78] sm:$0xff]
    %119 = vmatprep.subr.mxu0 0.0
    %120 = vmatpush1.xpose.msra.mxu0 %v103
    %121 = vmatprep.subr.mxu0 0.0
    %122 = vmatpush1.xpose.msra.mxu0 %v104
    %123 = vmatprep.subr.mxu0 0.0
    %124 = vmatpush1.xpose.msra.mxu0 %v105
    %125 = vmatprep.subr.mxu0 0.0
    %126 = vmatpush1.xpose.msra.mxu0 %v106
    %127 = vmatprep.subr.mxu0 0.0
    %128 = vmatpush1.xpose.msra.mxu0 %v107
    %129 = vmatprep.subr.mxu0 0.0
    %130 = vmatpush1.xpose.msra.mxu0 %v108
    %131 = vmatprep.subr.mxu0 0.0
    %132 = vmatpush1.xpose.msra.mxu0 %v109
    %133 = vmatprep.subr.mxu0 0.0
    %134 = vmatpush1.xpose.msra.mxu0 %v110
    %135 = vmatprep.subr.mxu0 0.0
    %136 = vmatpush1.xpose.msra.mxu0 %v111
    %137 = vmatprep.subr.mxu0 0.0
    %138 = vmatpush1.xpose.msra.mxu0 %v112
    %139 = vmatprep.subr.mxu0 0.0
    %140 = vmatpush1.xpose.msra.mxu0 %v113
    %141 = vmatprep.subr.mxu0 0.0
    %142 = vmatpush1.xpose.msra.mxu0 %v114
    %143 = vmatprep.subr.mxu0 0.0
    %144 = vmatpush1.xpose.msra.mxu0 %v115
    %145 = vmatprep.subr.mxu0 0.0
    %146 = vmatpush1.xpose.msra.mxu0 %v116
    %147 = vmatprep.subr.mxu0 0.0
    %148 = vmatpush1.xpose.msra.mxu0 %v117
    %149 = vmatprep.subr.mxu0 0.0
    %150 = vmatpush1.xpose.msra.mxu0 %v118
    %151 = vmatprep.subr.mxu0 0.0
    %152 = vmatpush1.xpose.msra.mxu0 0.0
    %153 = vmatprep.subr.mxu0 0.0
    %154 = vmatpush1.xpose.msra.mxu0 0.0
    %155 = vmatprep.subr.mxu0 0.0
    %156 = vmatpush1.xpose.msra.mxu0 0.0
    %157 = vmatprep.subr.mxu0 0.0
    %158 = vmatpush1.xpose.msra.mxu0 0.0
    %159 = vmatprep.subr.mxu0 0.0
    %160 = vmatpush1.xpose.msra.mxu0 0.0
    %161 = vmatprep.subr.mxu0 0.0
    %162 = vmatpush1.xpose.msra.mxu0 0.0
    %163 = vmatprep.subr.mxu0 0.0
    %164 = vmatpush1.xpose.msra.mxu0 0.0
    %165 = vmatprep.subr.mxu0 0.0
    %166 = vmatpush1.xpose.msra.mxu0 0.0
    %167 = vmatprep.subr.mxu0 0.0
    %168 = vmatpush1.xpose.msra.mxu0 0.0
    %169 = vmatprep.subr.mxu0 0.0
    %170 = vmatpush1.xpose.msra.mxu0 0.0
    %171 = vmatprep.subr.mxu0 0.0
    %172 = vmatpush1.xpose.msra.mxu0 0.0
    %173 = vmatprep.subr.mxu0 0.0
    %174 = vmatpush1.xpose.msra.mxu0 0.0
    %175 = vmatprep.subr.mxu0 0.0
    %176 = vmatpush1.xpose.msra.mxu0 0.0
    %177 = vmatprep.subr.mxu0 0.0
    %178 = vmatpush1.xpose.msra.mxu0 0.0
    %179 = vmatprep.subr.mxu0 0.0
    %180 = vmatpush1.xpose.msra.mxu0 0.0
    %181 = vmatprep.subr.mxu0 0.0
    %182 = vmatpush1.xpose.msra.mxu0 0.0
    %183 = vmatprep.mubr.f32.mxu0 0.0
    %184 = vmatmul.mubr.f32.gmra.mrb[0].mxu0 %v102
    %v185 = vpop.f32.mrb[0].mxu0
    %v186 = vadd.f32 0.0, %v185
    %v187 = vpop.f32.mrb[0].mxu0
    %188 = vdwg.mxu0
    %v189 = vmax.f32 %v186, 0.0
    %190 = vst [vmem:[#allocation2] sm:$0xff] %v189
    // Predicated region
    $region14: #{adapter_forward.1} parent=1 // pred_check
      _
    $region15: #{adapter_forward.1} parent=1 // pred_check_branch
      %192 = sbr.rel (0) target = $region17
    $region16: #{adapter_forward.1} parent=1 // pred_region
      %s194 = ssub.s32 128, 128
      %195 = vsyncadd [#allocation3], %s194
      %s197 = sshll.u32 [#allocation2], 4
      %s198 = int_to_ptr.vmem [resolvable:$true] %s197
      %200 = dma.vmem_to_hbm [thread:$0]  %s198, 128, %s3, [#allocation3]
    $region17: #{adapter_forward.1} parent=1 // pred_fallthru
      _
    // Predicated region
    $region18: #{adapter_forward.1} parent=1 // pred_check
      _
    $region19: #{adapter_forward.1} parent=1 // pred_check_branch
      %202 = sbr.rel (0) target = $region21
    $region20: #{adapter_forward.1} parent=1 // pred_region
      %203 = dma.done [#allocation3], 128
    $region21: #{adapter_forward.1} parent=1 // pred_fallthru
      _
    %204 = vsyncpa [#allocation3], 1

</llo_original>
